<compile_context>
chip_gen: v5e
topology: v5e:2x2
jax: 0.10.0
libtpu: 0.0.40
codegen_flags: <defaults>
</compile_context>

<pallas_src>
import functools
import math

import jax
import jax.numpy as jnp
from jax import lax
from jax.experimental import pallas as pl
from jax.experimental.pallas import tpu as pltpu

EPS = 1e-5
_MIB = 1024 * 1024
# Resident block footprint target; chosen so double-buffered in/out tiles plus
# f32 temporaries stay well inside v7x's 64 MiB physical VMEM (and trivially
# inside v5e/v6e's 128 MiB).
_VMEM_BUDGET = 24 * _MIB
# Explicit scoped-VMEM limit handed to the compiler (above the 16/32 MiB
# defaults, below v7x physical).
_VMEM_LIMIT = 40 * _MIB


def _ceil_to(x, m):
    return ((x + m - 1) // m) * m


# --------------------------- single-phase path -----------------------------

def _in2d_kernel(x_ref, o_ref):
    # x_ref / o_ref: (row_tile, H*W) -- each row is one (n, c) instance.
    x = x_ref[...].astype(jnp.float32)
    mean = jnp.mean(x, axis=-1, keepdims=True)
    xc = x - mean
    var = jnp.mean(xc * xc, axis=-1, keepdims=True)  # two-pass, no cancellation
    inv = lax.rsqrt(var + EPS)                       # EUP, effectively free
    o_ref[...] = (xc * inv).astype(o_ref.dtype)


def _in2d_single_phase(x2, row_tile):
    NC_pad, HW = x2.shape
    itemsize = x2.dtype.itemsize
    grid = (NC_pad // row_tile,)
    cost = pl.CostEstimate(
        flops=5 * NC_pad * HW,
        transcendentals=NC_pad,
        bytes_accessed=2 * NC_pad * HW * itemsize,
    )
    return pl.pallas_call(
        _in2d_kernel,
        out_shape=jax.ShapeDtypeStruct((NC_pad, HW), x2.dtype),
        grid_spec=pltpu.PrefetchScalarGridSpec(
            num_scalar_prefetch=0,
            grid=grid,
            in_specs=[pl.BlockSpec((row_tile, HW), lambda i: (i, 0))],
            out_specs=pl.BlockSpec((row_tile, HW), lambda i: (i, 0)),
        ),
        compiler_params=pltpu.CompilerParams(
            dimension_semantics=("parallel",),
            vmem_limit_bytes=_VMEM_LIMIT,
        ),
        cost_estimate=cost,
    )(x2)


# ------------------------ two-phase (large H*W) path ------------------------

def _in2d_stats_kernel(hw, hw_tile, x_ref, mean_ref, rstd_ref):
    # Accumulate running mean (mean_ref) and centered sum of squares
    # (rstd_ref, holding M2 until the final step) across H*W chunks using
    # Chan's parallel-variance combine (numerically equivalent to two-pass).
    j = pl.program_id(1)

    @pl.when(j == 0)
    def _():
        mean_ref[...] = jnp.zeros_like(mean_ref)
        rstd_ref[...] = jnp.zeros_like(rstd_ref)

    x = x_ref[...].astype(jnp.float32)
    col = j * hw_tile + lax.broadcasted_iota(jnp.int32, x.shape, 1)
    valid = col < hw                                    # mask H*W padding
    n_b = jnp.minimum(hw - j * hw_tile, hw_tile).astype(jnp.float32)

    xm = jnp.where(valid, x, 0.0)
    sum_b = jnp.sum(xm, axis=-1, keepdims=True)
    mean_b = sum_b / n_b
    xc = jnp.where(valid, x - mean_b, 0.0)
    m2_b = jnp.sum(xc * xc, axis=-1, keepdims=True)

    n_a = (j * hw_tile).astype(jnp.float32)
    n_ab = n_a + n_b
    mean_a = mean_ref[...]
    delta = mean_b - mean_a
    mean_ref[...] = mean_a + delta * (n_b / n_ab)
    rstd_ref[...] = rstd_ref[...] + m2_b + delta * delta * (n_a * n_b / n_ab)

    @pl.when(j == pl.num_programs(1) - 1)
    def _():
        var = rstd_ref[...] * (1.0 / hw)
        rstd_ref[...] = lax.rsqrt(var + EPS)


def _in2d_apply_kernel(x_ref, mean_ref, rstd_ref, o_ref):
    x = x_ref[...].astype(jnp.float32)
    o_ref[...] = ((x - mean_ref[...]) * rstd_ref[...]).astype(o_ref.dtype)


def _in2d_two_phase(x2, hw, row_tile, hw_tile):
    """x2: (NC_pad, HW_pad) with HW_pad % hw_tile == 0; `hw` = true H*W."""
    NC_pad, HW_pad = x2.shape
    itemsize = x2.dtype.itemsize
    grid = (NC_pad // row_tile, HW_pad // hw_tile)

    stats_cost = pl.CostEstimate(
        flops=5 * NC_pad * HW_pad,
        transcendentals=NC_pad,
        bytes_accessed=NC_pad * HW_pad * itemsize + 2 * NC_pad * 4,
    )
    mean, rstd = pl.pallas_call(
        functools.partial(_in2d_stats_kernel, hw, hw_tile),
        out_shape=(
            jax.ShapeDtypeStruct((NC_pad, 1), jnp.float32),
            jax.ShapeDtypeStruct((NC_pad, 1), jnp.float32),
        ),
        grid_spec=pltpu.PrefetchScalarGridSpec(
            num_scalar_prefetch=0,
            grid=grid,
            in_specs=[pl.BlockSpec((row_tile, hw_tile), lambda i, j: (i, j))],
            out_specs=[
                pl.BlockSpec((row_tile, 1), lambda i, j: (i, 0)),
                pl.BlockSpec((row_tile, 1), lambda i, j: (i, 0)),
            ],
        ),
        compiler_params=pltpu.CompilerParams(
            dimension_semantics=("parallel", "arbitrary"),
            vmem_limit_bytes=_VMEM_LIMIT,
        ),
        cost_estimate=stats_cost,
    )(x2)

    apply_cost = pl.CostEstimate(
        flops=2 * NC_pad * HW_pad,
        transcendentals=0,
        bytes_accessed=2 * NC_pad * HW_pad * itemsize,
    )
    y = pl.pallas_call(
        _in2d_apply_kernel,
        out_shape=jax.ShapeDtypeStruct((NC_pad, HW_pad), x2.dtype),
        grid_spec=pltpu.PrefetchScalarGridSpec(
            num_scalar_prefetch=0,
            grid=grid,
            in_specs=[
                pl.BlockSpec((row_tile, hw_tile), lambda i, j: (i, j)),
                pl.BlockSpec((row_tile, 1), lambda i, j: (i, 0)),
                pl.BlockSpec((row_tile, 1), lambda i, j: (i, 0)),
            ],
            out_specs=pl.BlockSpec((row_tile, hw_tile), lambda i, j: (i, j)),
        ),
        compiler_params=pltpu.CompilerParams(
            dimension_semantics=("parallel", "parallel"),
            vmem_limit_bytes=_VMEM_LIMIT,
        ),
        cost_estimate=apply_cost,
    )(x2, mean, rstd)
    return y


# -------------------------------- wrapper ----------------------------------

def instance_norm_2d(x):
    """InstanceNorm2d (no affine, eps=1e-5), x: (N, C, H, W) -> (N, C, H, W)."""
    N, C, H, W = x.shape
    NC, HW = N * C, H * W
    x2 = x.reshape(NC, HW)
    itemsize = x.dtype.itemsize

    # Row granularity = full sublane packing: 8 rows f32, 16 bf16, 32 int8.
    g = max(8, 32 // itemsize)
    nc_pad = _ceil_to(NC, g)

    # Estimated resident bytes per row of a single-phase block:
    # 2x in + 2x out double buffers (itemsize each) + ~3 f32 temporaries.
    per_row_bytes = HW * (4 * itemsize + 12)

    if per_row_bytes * g > _VMEM_BUDGET:
        # Large-spatial path: a minimal row block does not fit the budget.
        row_tile = g
        hw_tile = max(128, ((2 * _MIB) // (row_tile * itemsize)) // 128 * 128)
        hw_tile = min(hw_tile, _ceil_to(HW, 128))
        hw_pad = _ceil_to(HW, hw_tile)
        if nc_pad != NC or hw_pad != HW:
            x2 = jnp.pad(x2, ((0, nc_pad - NC), (0, hw_pad - HW)))
        y2 = _in2d_two_phase(x2, HW, row_tile, hw_tile)
        return y2[:NC, :HW].reshape(N, C, H, W)

    # Single-phase path: whole H*W per row resident; choose the largest row
    # tile that fits the VMEM budget (amortizes ~0.35 us/grid-step overhead),
    # capped at a few MiB per block buffer and so that v7x's two TensorCores
    # both get grid steps when N*C allows it.
    row_tile = _VMEM_BUDGET // per_row_bytes
    row_tile = min(row_tile, max(g, (4 * _MIB) // (HW * itemsize)))
    row_tile = min(row_tile, 1024, nc_pad)
    if nc_pad >= 2 * g:
        row_tile = min(row_tile, (nc_pad // 2) // g * g)   # >= 2 grid steps
    row_tile = max(g, row_tile // g * g)
    while nc_pad % row_tile != 0:                          # avoid over-padding
        row_tile -= g

    if nc_pad != NC:
        x2 = jnp.pad(x2, ((0, nc_pad - NC), (0, 0)))
    y2 = _in2d_single_phase(x2, row_tile)
    return y2[:NC].reshape(N, C, H, W)


def _reference_in2d(x):
    xf = x.astype(jnp.float32)
    mean = jnp.mean(xf, axis=(2, 3), keepdims=True)
    var = jnp.mean((xf - mean) ** 2, axis=(2, 3), keepdims=True)
    return ((xf - mean) / jnp.sqrt(var + EPS)).astype(x.dtype)


if __name__ == "__main__":
    key = jax.random.PRNGKey(0)

    # Main (single-phase, adaptive row tile) path.
    x = jax.random.normal(key, (2, 4, 16, 16), dtype=jnp.float32)
    y = jax.block_until_ready(instance_norm_2d(x))
    y_ref = _reference_in2d(x)
    assert y.shape == x.shape and y.dtype == x.dtype
    assert jnp.allclose(y, y_ref, atol=1e-5, rtol=1e-5), "single-phase mismatch"

    # N*C not a multiple of the row granularity (exercises row padding).
    x3 = jax.random.normal(jax.random.PRNGKey(1), (1, 3, 16, 16), jnp.float32)
    y3 = jax.block_until_ready(instance_norm_2d(x3))
    assert jnp.allclose(y3, _reference_in2d(x3), atol=1e-5, rtol=1e-5), \
        "padded-NC mismatch"

    # Large-spatial (two-phase) path, forced at a small shape for validation.
    x2 = x.reshape(8, 256)
    y2 = jax.block_until_ready(_in2d_two_phase(x2, 256, 8, 128))
    assert jnp.allclose(y2.reshape(2, 4, 16, 16), y_ref, atol=1e-5, rtol=1e-5), \
        "two-phase mismatch"

    print("KERNEL_OK")
</pallas_src>

<mosaic_0001>
module attributes {stable_mosaic.version = 11 : i64} {
  func.func @_in2d_kernel(%arg0: i32, %arg1: memref<8x256xf32, #tpu.memory_space<vmem>>, %arg2: memref<8x256xf32, #tpu.memory_space<vmem>>) attributes {dimension_semantics = [#tpu.dimension_semantics<parallel>], iteration_bounds = array<i64: 1>, scalar_prefetch = 0 : i64, scratch_operands = 0 : i64, tpu.core_type = #tpu.core_type<tc>, window_params = [{transform_indices = @transform_0, window_bounds = array<i64: 8, 256>}, {transform_indices = @transform_1, window_bounds = array<i64: 8, 256>}]} {
    %c0 = arith.constant 0 : index
    %c0_0 = arith.constant 0 : index
    %0 = vector.load %arg1[%c0, %c0_0] : memref<8x256xf32, #tpu.memory_space<vmem>>, vector<8x256xf32>
    %cst = arith.constant dense<0.000000e+00> : vector<8xf32>
    %1 = vector.multi_reduction <add>, %0, %cst [1] : vector<8x256xf32> to vector<8xf32>
    %2 = vector.shape_cast %1 : vector<8xf32> to vector<8x1xf32>
    %cst_1 = arith.constant 2.560000e+02 : f32
    %3 = vector.broadcast %cst_1 : f32 to vector<8x1xf32>
    %4 = arith.divf %2, %3 : vector<8x1xf32>
    %5 = vector.broadcast %4 : vector<8x1xf32> to vector<8x256xf32>
    %6 = arith.subf %0, %5 : vector<8x256xf32>
    %7 = arith.mulf %6, %6 : vector<8x256xf32>
    %cst_2 = arith.constant dense<0.000000e+00> : vector<8xf32>
    %8 = vector.multi_reduction <add>, %7, %cst_2 [1] : vector<8x256xf32> to vector<8xf32>
    %9 = vector.shape_cast %8 : vector<8xf32> to vector<8x1xf32>
    %cst_3 = arith.constant 2.560000e+02 : f32
    %10 = vector.broadcast %cst_3 : f32 to vector<8x1xf32>
    %11 = arith.divf %9, %10 : vector<8x1xf32>
    %cst_4 = arith.constant 9.99999974E-6 : f32
    %12 = vector.broadcast %cst_4 : f32 to vector<8x1xf32>
    %13 = arith.addf %11, %12 : vector<8x1xf32>
    %14 = math.rsqrt %13 : vector<8x1xf32>
    %15 = vector.broadcast %14 : vector<8x1xf32> to vector<8x256xf32>
    %16 = arith.mulf %6, %15 : vector<8x256xf32>
    %c0_5 = arith.constant 0 : index
    %c0_6 = arith.constant 0 : index
    %17 = vector.load %arg2[%c0_5, %c0_6] : memref<8x256xf32, #tpu.memory_space<vmem>>, vector<8x256xf32>
    tpu.vector_store %arg2[%c0_5, %c0_6], %16 {strides = array<i32>} : memref<8x256xf32, #tpu.memory_space<vmem>>, vector<8x256xf32>,
    return
  }
  func.func @transform_0(%arg0: i32) -> (i32, i32) {
    %c0_i32 = arith.constant 0 : i32
    %c0_i32_0 = arith.constant 0 : i32
    return %arg0, %c0_i32 : i32, i32
  }
  func.func @transform_1(%arg0: i32) -> (i32, i32) {
    %c0_i32 = arith.constant 0 : i32
    %c0_i32_0 = arith.constant 0 : i32
    return %arg0, %c0_i32 : i32, i32
  }
}

</mosaic_0001>

<llo_original>
// kernel: tpu_custom_call.1
$region0: #{tpu_custom_call.1}
  #allocation0 [shape = 'u32[]', space=smem, size = 0x4, offset = 0x4, fixed_abs, tag = 'smem constant byte address 0x4 - core index']
  #allocation1 [shape = 'u32[72,128]{1,0:T(1,128)}', space=vmem, size = 0x9000, scoped, tag = 'internal scratch']
  %s0 = inlined_call_operand.hbm [shape: f32[8,256], index: 0, kind: input, shape index: {}]
  %s1 = inlined_call_operand.hbm [shape: f32[8,256], index: 1, kind: output, shape index: {}]
  %s2 = sld [smem:[#allocation0]]
  $region18: #{tpu_custom_call.1} parent=0
    _
  %s4 = ssub.s32 1, %s2
  %s5 = scalar_select 0, %s4, %s2
  $region1: #{tpu_custom_call.1} parent=0
    #allocation2 [shape = 'u8[8192]{0}', space=vmem, size = 0x2000, scoped, tag = 'input window, operand 0, single buffered']
    #allocation3 [shape = 's32[1]{0}', space=sflag, size = 0x4, scoped, tag = 'scoped memory for tpu_custom_call.1']
    #allocation4 [shape = 's32[1]{0}', space=sflag, size = 0x4, scoped, tag = 'scoped memory for tpu_custom_call.1']
    #allocation5 [shape = 'u8[8192]{0}', space=vmem, size = 0x2000, scoped, tag = 'output window, operand 0, single buffered']
    %6 = vsyncpa [#allocation3], 0
    %7 = vsyncpa [#allocation4], 0
    // Predicated region
    $region2: #{tpu_custom_call.1} parent=1 // pred_check
      _
    $region3: #{tpu_custom_call.1} parent=1 // pred_check_branch
      %9 = sbr.rel (0) target = $region5
    $region4: #{tpu_custom_call.1} parent=1 // pred_region
      %11 = vsyncadd [#allocation3], 0
      %s13 = sshll.u32 %s0, 4
      %s14 = int_to_ptr.hbm [resolvable:$true] %s13
      %s15 = sshll.u32 [#allocation2], 4
      %s16 = int_to_ptr.vmem [resolvable:$true] %s15
      %18 = dma.hbm_to_vmem [thread:$0]  %s14, 256, %s16, [#allocation3]
    $region5: #{tpu_custom_call.1} parent=1 // pred_fallthru
      _
    // Predicated region
    $region6: #{tpu_custom_call.1} parent=1 // pred_check
      _
    $region7: #{tpu_custom_call.1} parent=1 // pred_check_branch
      %20 = sbr.rel (0) target = $region9
    $region8: #{tpu_custom_call.1} parent=1 // pred_region
      %22 = dma.done [#allocation3], 256
    $region9: #{tpu_custom_call.1} parent=1 // pred_fallthru
      _
    %v23 = vld [vmem:[#allocation2] sm:$0xff]
    %v24 = vld [vmem:[#allocation2 + $0x8] sm:$0xff]
    %v25 = vadd.f32 %v23, %v24
    %26 = vadd.xlane.f32.xlu0 %v25
    %v27 = vpop.xlane.xlu0 %26
    %v28 = vrcp.pop 256.0
    %v29 = vmul.f32 256.0, %v28
    %v30 = vsub.f32 1.0, %v29
    %v31 = vmul.f32 %v28, %v30
    %v32 = vadd.f32 %v28, %v31
    %vm33 = vweird.f32 %v28
    %v34 = vsel %vm33, %v28, %v32
    %v35 = vmul.f32 %v27, %v34
    %v36 = vsub.f32 %v23, %v35
    %v37 = vsub.f32 %v24, %v35
    %v38 = vmul.f32 %v36, %v36
    %v39 = vmul.f32 %v37, %v37
    %v40 = vadd.f32 %v38, %v39
    %41 = vadd.xlane.f32.xlu0 %v40
    %v42 = vpop.xlane.xlu0 %41
    %v43 = vmul.f32 %v42, %v34
    %v44 = vadd.f32 %v43, 1e-05
    %v45 = vrsqrt.pop %v44
    %v46 = vmul.f32 %v45, %v44
    %v47 = vmul.f32 %v46, %v45
    %v48 = vmul.f32 0.5, %v47
    %v49 = vsub.f32 1.5, %v48
    %v50 = vmul.f32 %v45, %v49
    %vm51 = vweird.f32 %v44
    %vm52 = vweird.f32 %v45
    %vm53 = vmor %vm51, %vm52
    %v54 = vsel %vm53, %v45, %v50
    %v55 = vmul.f32 %v36, %v54
    %v56 = vmul.f32 %v37, %v54
    %57 = vst [vmem:[#allocation5] sm:$0xff] %v55
    %58 = vst [vmem:[#allocation5 + $0x8] sm:$0xff] %v56
    // Predicated region
    $region10: #{tpu_custom_call.1} parent=1 // pred_check
      _
    $region11: #{tpu_custom_call.1} parent=1 // pred_check_branch
      %60 = sbr.rel (0) target = $region13
    $region12: #{tpu_custom_call.1} parent=1 // pred_region
      %62 = vsyncadd [#allocation4], 0
      %s64 = sshll.u32 [#allocation5], 4
      %s65 = int_to_ptr.vmem [resolvable:$true] %s64
      %s66 = sshll.u32 %s1, 4
      %s67 = int_to_ptr.hbm [resolvable:$true] %s66
      %69 = dma.vmem_to_hbm [thread:$0]  %s65, 256, %s67, [#allocation4]
    $region13: #{tpu_custom_call.1} parent=1 // pred_fallthru
      _
    // Predicated region
    $region14: #{tpu_custom_call.1} parent=1 // pred_check
      _
    $region15: #{tpu_custom_call.1} parent=1 // pred_check_branch
      %71 = sbr.rel (0) target = $region17
    $region16: #{tpu_custom_call.1} parent=1 // pred_region
      %73 = dma.done [#allocation4], 256
    $region17: #{tpu_custom_call.1} parent=1 // pred_fallthru
      _
    %74 = vsyncpa [#allocation3], 1
    %75 = vsyncpa [#allocation4], 1

</llo_original>
